<compile_context>
chip_gen: v6e
topology: v6e:2x2x1
jax: 0.10.0
libtpu: 0.0.40
codegen_flags: <defaults>
</compile_context>

<pallas_src>
import math
from functools import partial

import jax
import jax.numpy as jnp
from jax.experimental import pallas as pl
from jax.experimental.pallas import tpu as pltpu


def _cdiv(a, b):
    return (a + b - 1) // b


def _round_up(x, m):
    return ((x + m - 1) // m) * m


def _choose_b_tile(B, block_b):
    """Batch tile: big for roofline, but >=2 grid steps when B allows (v7x)."""
    if B <= 8:
        return 8
    two_step = _round_up(_cdiv(B, 2), 8)   # split batch across >=2 grid steps
    return max(8, min(block_b, two_step))


# --------------------------------------------------------------------------
# Kernel: one (b_tile, num_inputs) batch tile -> (b_tile, A) and (b_tile, 1)
# --------------------------------------------------------------------------
def _dueling_kernel(x_ref, w_f_ref, b_f_ref, w_h_ref, b_h_ref,
                    w_o_ref, b_o_ref, adv_ref, val_ref, *, compute_dtype, A):
    x = x_ref[...].astype(compute_dtype)

    # feature: relu(x @ W_f + b_f)                      (b_tile, H)
    h = jnp.dot(x, w_f_ref[...], preferred_element_type=jnp.float32)
    h = jnp.maximum(h + b_f_ref[...], 0.0)

    # fused branch hidden layers: relu(h @ [W_a1|W_v1] + [b_a1|b_v1])  (b_tile, 2H)
    g = jnp.dot(h.astype(compute_dtype), w_h_ref[...],
                preferred_element_type=jnp.float32)
    g = jnp.maximum(g + b_h_ref[...], 0.0)

    # fused heads: g @ blockdiag(W_a2, W_v2) + [b_a2|b_v2]             (b_tile, A+1)
    out = jnp.dot(g.astype(compute_dtype), w_o_ref[...],
                  preferred_element_type=jnp.float32) + b_o_ref[...]

    adv_ref[...] = out[:, :A].astype(adv_ref.dtype)
    val_ref[...] = out[:, A:A + 1].astype(val_ref.dtype)


# --------------------------------------------------------------------------
# One-time weight plumbing (call once per parameter update, NOT per forward)
# --------------------------------------------------------------------------
def pack_params(params, compute_dtype=jnp.float32):
    """Pre-transpose / fuse weights into MXU-friendly (in, out) layouts."""
    f32 = jnp.float32
    H = params["w_f"].shape[0]
    A = params["w_a2"].shape[0]

    w_f = params["w_f"].T.astype(compute_dtype)                       # (Din, H)
    b_f = params["b_f"].reshape(1, H).astype(f32)
    w_h = jnp.concatenate([params["w_a1"].T, params["w_v1"].T],
                          axis=1).astype(compute_dtype)               # (H, 2H)
    b_h = jnp.concatenate([params["b_a1"], params["b_v1"]]
                          ).reshape(1, 2 * H).astype(f32)
    w_o = jnp.zeros((2 * H, A + 1), f32)                              # (2H, A+1)
    w_o = w_o.at[:H, :A].set(params["w_a2"].T)
    w_o = w_o.at[H:, A:].set(params["w_v2"].T)
    w_o = w_o.astype(compute_dtype)
    b_o = jnp.concatenate([params["b_a2"], params["b_v2"]]
                          ).reshape(1, A + 1).astype(f32)

    return dict(w_f=w_f, b_f=b_f, w_h=w_h, b_h=b_h, w_o=w_o, b_o=b_o,
                H=H, A=A, compute_dtype=compute_dtype)


# --------------------------------------------------------------------------
# Forward wrapper
# --------------------------------------------------------------------------
def dueling_network_forward(x, packed, *, block_b=512):
    """Pallas forward pass. Returns (value, advantage) like the torch module."""
    B, num_inputs = x.shape
    H, A = packed["H"], packed["A"]
    compute_dtype = packed["compute_dtype"]
    f32 = jnp.float32

    b_tile = _choose_b_tile(B, block_b)
    grid = (_cdiv(B, b_tile),)      # partial last block handled by Pallas
                                    # (garbage reads harmless, masked writes)

    def full2d(a):
        return pl.BlockSpec(a.shape, lambda i: (0, 0))

    advantage, value = pl.pallas_call(
        partial(_dueling_kernel, compute_dtype=compute_dtype, A=A),
        out_shape=(jax.ShapeDtypeStruct((B, A), f32),
                   jax.ShapeDtypeStruct((B, 1), f32)),
        grid=grid,
        in_specs=[pl.BlockSpec((b_tile, num_inputs), lambda i: (i, 0)),
                  full2d(packed["w_f"]), full2d(packed["b_f"]),
                  full2d(packed["w_h"]), full2d(packed["b_h"]),
                  full2d(packed["w_o"]), full2d(packed["b_o"])],
        out_specs=(pl.BlockSpec((b_tile, A), lambda i: (i, 0)),
                   pl.BlockSpec((b_tile, 1), lambda i: (i, 0))),
        compiler_params=pltpu.CompilerParams(
            dimension_semantics=("parallel",)),
    )(x, packed["w_f"], packed["b_f"], packed["w_h"], packed["b_h"],
      packed["w_o"], packed["b_o"])

    return value, advantage


# --------------------------------------------------------------------------
# Init + reference (mirror the torch module)
# --------------------------------------------------------------------------
def init_params(key, num_inputs, hidden_size, num_actions):
    """Mirror torch init_weights: kaiming_uniform_(a=0, fan_in), zero bias."""
    def kaiming_uniform(k, out_f, in_f):
        bound = math.sqrt(6.0 / in_f)
        return jax.random.uniform(k, (out_f, in_f), jnp.float32, -bound, bound)

    ks = jax.random.split(key, 5)
    H, A = hidden_size, num_actions
    z = lambda n: jnp.zeros((n,), jnp.float32)
    return dict(
        w_f=kaiming_uniform(ks[0], H, num_inputs), b_f=z(H),
        w_a1=kaiming_uniform(ks[1], H, H),         b_a1=z(H),
        w_a2=kaiming_uniform(ks[2], A, H),         b_a2=z(A),
        w_v1=kaiming_uniform(ks[3], H, H),         b_v1=z(H),
        w_v2=kaiming_uniform(ks[4], 1, H),         b_v2=z(1),
    )


def reference_forward(x, params):
    """Plain-JAX reference identical to the PyTorch module."""
    h = jnp.maximum(x @ params["w_f"].T + params["b_f"], 0.0)
    a_h = jnp.maximum(h @ params["w_a1"].T + params["b_a1"], 0.0)
    advantage = a_h @ params["w_a2"].T + params["b_a2"]
    v_h = jnp.maximum(h @ params["w_v1"].T + params["b_v1"], 0.0)
    value = v_h @ params["w_v2"].T + params["b_v2"]
    return value, advantage


if __name__ == "__main__":
    key = jax.random.PRNGKey(0)
    k_params, k_x = jax.random.split(key)

    # B=50 is deliberately NOT a multiple of the batch tile -> exercises the
    # masked partial-last-block writeback, and grid=(2,) (both v7x TCs used).
    batch, num_inputs, hidden_size, num_actions = 50, 16, 32, 4

    params = init_params(k_params, num_inputs, hidden_size, num_actions)
    x = jax.random.normal(k_x, (batch, num_inputs), jnp.float32)

    v_ref, a_ref = reference_forward(x, params)

    # ---- f32 MXU-operand path: exact parity with the PyTorch module -------
    packed_f32 = pack_params(params, compute_dtype=jnp.float32)
    value, advantage = dueling_network_forward(x, packed_f32)
    value, advantage = jax.block_until_ready((value, advantage))

    assert value.shape == (batch, 1)
    assert advantage.shape == (batch, num_actions)
    assert bool(jnp.all(jnp.isfinite(value))) and bool(jnp.all(jnp.isfinite(advantage)))
    assert jnp.allclose(value, v_ref, rtol=1e-5, atol=1e-5)
    assert jnp.allclose(advantage, a_ref, rtol=1e-5, atol=1e-5)

    # ---- bf16 MXU-operand fast path (v5e/v6e/v7x), f32 accumulate ----------
    # Not bit-exact with the PyTorch f32 module; relaxed tolerance.
    packed_bf16 = pack_params(params, compute_dtype=jnp.bfloat16)
    v16, a16 = jax.block_until_ready(dueling_network_forward(x, packed_bf16))
    assert jnp.allclose(v16, v_ref, rtol=2e-2, atol=2e-2)
    assert jnp.allclose(a16, a_ref, rtol=2e-2, atol=2e-2)

    print("KERNEL_OK")
</pallas_src>

<mosaic_0001>
module attributes {stable_mosaic.version = 11 : i64} {
  func.func @_dueling_kernel(%arg0: i32, %arg1: memref<32x16xf32, #tpu.memory_space<vmem>>, %arg2: memref<16x32xf32, #tpu.memory_space<vmem>>, %arg3: memref<1x32xf32, #tpu.memory_space<vmem>>, %arg4: memref<32x64xf32, #tpu.memory_space<vmem>>, %arg5: memref<1x64xf32, #tpu.memory_space<vmem>>, %arg6: memref<64x5xf32, #tpu.memory_space<vmem>>, %arg7: memref<1x5xf32, #tpu.memory_space<vmem>>, %arg8: memref<32x4xf32, #tpu.memory_space<vmem>>, %arg9: memref<32x1xf32, #tpu.memory_space<vmem>>) attributes {dimension_semantics = [#tpu.dimension_semantics<parallel>], iteration_bounds = array<i64: 2>, scalar_prefetch = 0 : i64, scratch_operands = 0 : i64, tpu.core_type = #tpu.core_type<tc>, window_params = [{transform_indices = @transform_0, window_bounds = array<i64: 32, 16>}, {pipeline_mode = #tpu.pipeline_mode<synchronous>, transform_indices = @transform_1, window_bounds = array<i64: 16, 32>}, {pipeline_mode = #tpu.pipeline_mode<synchronous>, transform_indices = @transform_2, window_bounds = array<i64: 1, 32>}, {pipeline_mode = #tpu.pipeline_mode<synchronous>, transform_indices = @transform_3, window_bounds = array<i64: 32, 64>}, {pipeline_mode = #tpu.pipeline_mode<synchronous>, transform_indices = @transform_4, window_bounds = array<i64: 1, 64>}, {pipeline_mode = #tpu.pipeline_mode<synchronous>, transform_indices = @transform_5, window_bounds = array<i64: 64, 5>}, {pipeline_mode = #tpu.pipeline_mode<synchronous>, transform_indices = @transform_6, window_bounds = array<i64: 1, 5>}, {transform_indices = @transform_7, window_bounds = array<i64: 32, 4>}, {transform_indices = @transform_8, window_bounds = array<i64: 32, 1>}]} {
    %c0 = arith.constant 0 : index
    %c0_0 = arith.constant 0 : index
    %0 = vector.load %arg1[%c0, %c0_0] : memref<32x16xf32, #tpu.memory_space<vmem>>, vector<32x16xf32>
    %c0_1 = arith.constant 0 : index
    %c0_2 = arith.constant 0 : index
    %1 = vector.load %arg2[%c0_1, %c0_2] : memref<16x32xf32, #tpu.memory_space<vmem>>, vector<16x32xf32>
    %cst = arith.constant dense<0.000000e+00> : vector<32x32xf32>
    %2 = tpu.matmul %0, %1, %cst {dimension_numbers = #tpu.dot_dimension_numbers<[1], [0], [0], [1], [0, 0, 1, 1], [], []>} : vector<32x16xf32>, vector<16x32xf32>, vector<32x32xf32> -> vector<32x32xf32>
    %c0_3 = arith.constant 0 : index
    %c0_4 = arith.constant 0 : index
    %3 = vector.load %arg3[%c0_3, %c0_4] : memref<1x32xf32, #tpu.memory_space<vmem>>, vector<1x32xf32>
    %4 = vector.broadcast %3 : vector<1x32xf32> to vector<32x32xf32>
    %5 = arith.addf %2, %4 : vector<32x32xf32>
    %cst_5 = arith.constant 0.000000e+00 : f32
    %6 = vector.broadcast %cst_5 : f32 to vector<32x32xf32>
    %7 = arith.maximumf %5, %6 : vector<32x32xf32>
    %c0_6 = arith.constant 0 : index
    %c0_7 = arith.constant 0 : index
    %8 = vector.load %arg4[%c0_6, %c0_7] : memref<32x64xf32, #tpu.memory_space<vmem>>, vector<32x64xf32>
    %cst_8 = arith.constant dense<0.000000e+00> : vector<32x64xf32>
    %9 = tpu.matmul %7, %8, %cst_8 {dimension_numbers = #tpu.dot_dimension_numbers<[1], [0], [0], [1], [0, 0, 1, 1], [], []>} : vector<32x32xf32>, vector<32x64xf32>, vector<32x64xf32> -> vector<32x64xf32>
    %c0_9 = arith.constant 0 : index
    %c0_10 = arith.constant 0 : index
    %10 = vector.load %arg5[%c0_9, %c0_10] : memref<1x64xf32, #tpu.memory_space<vmem>>, vector<1x64xf32>
    %11 = vector.broadcast %10 : vector<1x64xf32> to vector<32x64xf32>
    %12 = arith.addf %9, %11 : vector<32x64xf32>
    %cst_11 = arith.constant 0.000000e+00 : f32
    %13 = vector.broadcast %cst_11 : f32 to vector<32x64xf32>
    %14 = arith.maximumf %12, %13 : vector<32x64xf32>
    %c0_12 = arith.constant 0 : index
    %c0_13 = arith.constant 0 : index
    %15 = vector.load %arg6[%c0_12, %c0_13] : memref<64x5xf32, #tpu.memory_space<vmem>>, vector<64x5xf32>
    %cst_14 = arith.constant dense<0.000000e+00> : vector<32x5xf32>
    %16 = tpu.matmul %14, %15, %cst_14 {dimension_numbers = #tpu.dot_dimension_numbers<[1], [0], [0], [1], [0, 0, 1, 1], [], []>} : vector<32x64xf32>, vector<64x5xf32>, vector<32x5xf32> -> vector<32x5xf32>
    %c0_15 = arith.constant 0 : index
    %c0_16 = arith.constant 0 : index
    %17 = vector.load %arg7[%c0_15, %c0_16] : memref<1x5xf32, #tpu.memory_space<vmem>>, vector<1x5xf32>
    %18 = vector.broadcast %17 : vector<1x5xf32> to vector<32x5xf32>
    %19 = arith.addf %16, %18 : vector<32x5xf32>
    %20 = vector.extract_strided_slice %19 {offsets = [0, 0], sizes = [32, 4], strides = [1, 1]} : vector<32x5xf32> to vector<32x4xf32>
    %c0_17 = arith.constant 0 : index
    %c0_18 = arith.constant 0 : index
    %21 = vector.load %arg8[%c0_17, %c0_18] : memref<32x4xf32, #tpu.memory_space<vmem>>, vector<32x4xf32>
    tpu.vector_store %arg8[%c0_17, %c0_18], %20 {strides = array<i32>} : memref<32x4xf32, #tpu.memory_space<vmem>>, vector<32x4xf32>,
    %22 = vector.extract_strided_slice %19 {offsets = [0, 4], sizes = [32, 1], strides = [1, 1]} : vector<32x5xf32> to vector<32x1xf32>
    %c0_19 = arith.constant 0 : index
    %c0_20 = arith.constant 0 : index
    %23 = vector.load %arg9[%c0_19, %c0_20] : memref<32x1xf32, #tpu.memory_space<vmem>>, vector<32x1xf32>
    tpu.vector_store %arg9[%c0_19, %c0_20], %22 {strides = array<i32>} : memref<32x1xf32, #tpu.memory_space<vmem>>, vector<32x1xf32>,
    return
  }
  func.func @transform_0(%arg0: i32) -> (i32, i32) {
    %c0_i32 = arith.constant 0 : i32
    %c0_i32_0 = arith.constant 0 : i32
    return %arg0, %c0_i32 : i32, i32
  }
  func.func @transform_1(%arg0: i32) -> (i32, i32) {
    %c0_i32 = arith.constant 0 : i32
    %c0_i32_0 = arith.constant 0 : i32
    %c0_i32_1 = arith.constant 0 : i32
    return %c0_i32, %c0_i32_0 : i32, i32
  }
  func.func @transform_2(%arg0: i32) -> (i32, i32) {
    %c0_i32 = arith.constant 0 : i32
    %c0_i32_0 = arith.constant 0 : i32
    %c0_i32_1 = arith.constant 0 : i32
    return %c0_i32, %c0_i32_0 : i32, i32
  }
  func.func @transform_3(%arg0: i32) -> (i32, i32) {
    %c0_i32 = arith.constant 0 : i32
    %c0_i32_0 = arith.constant 0 : i32
    %c0_i32_1 = arith.constant 0 : i32
    return %c0_i32, %c0_i32_0 : i32, i32
  }
  func.func @transform_4(%arg0: i32) -> (i32, i32) {
    %c0_i32 = arith.constant 0 : i32
    %c0_i32_0 = arith.constant 0 : i32
    %c0_i32_1 = arith.constant 0 : i32
    return %c0_i32, %c0_i32_0 : i32, i32
  }
  func.func @transform_5(%arg0: i32) -> (i32, i32) {
    %c0_i32 = arith.constant 0 : i32
    %c0_i32_0 = arith.constant 0 : i32
    %c0_i32_1 = arith.constant 0 : i32
    return %c0_i32, %c0_i32_0 : i32, i32
  }
  func.func @transform_6(%arg0: i32) -> (i32, i32) {
    %c0_i32 = arith.constant 0 : i32
    %c0_i32_0 = arith.constant 0 : i32
    %c0_i32_1 = arith.constant 0 : i32
    return %c0_i32, %c0_i32_0 : i32, i32
  }
  func.func @transform_7(%arg0: i32) -> (i32, i32) {
    %c0_i32 = arith.constant 0 : i32
    %c0_i32_0 = arith.constant 0 : i32
    return %arg0, %c0_i32 : i32, i32
  }
  func.func @transform_8(%arg0: i32) -> (i32, i32) {
    %c0_i32 = arith.constant 0 : i32
    %c0_i32_0 = arith.constant 0 : i32
    return %arg0, %c0_i32 : i32, i32
  }
}

</mosaic_0001>

<llo_original>
// kernel: tpu_custom_call.1
$region0: #{tpu_custom_call.1}
  #allocation0 [shape = 'u32[]', space=smem, size = 0x4, offset = 0x4, fixed_abs, tag = 'smem constant byte address 0x4 - core index']
  #allocation1 [shape = 'u32[144,128]{1,0:T(1,128)}', space=vmem, size = 0x12000, scoped, tag = 'internal scratch']
  %s0 = inlined_call_operand.vmem [shape: f32[50,16], index: 0, kind: input, shape index: {}]
  %s1 = inlined_call_operand.vmem [shape: f32[16,32], index: 1, kind: input, shape index: {}]
  %s2 = inlined_call_operand.vmem [shape: f32[1,32], index: 2, kind: input, shape index: {}]
  %s3 = inlined_call_operand.vmem [shape: f32[32,64], index: 3, kind: input, shape index: {}]
  %s4 = inlined_call_operand.vmem [shape: f32[1,64], index: 4, kind: input, shape index: {}]
  %s5 = inlined_call_operand.vmem [shape: f32[64,5], index: 5, kind: input, shape index: {}]
  %s6 = inlined_call_operand.vmem [shape: f32[1,5], index: 6, kind: input, shape index: {}]
  %s7 = inlined_call_operand.vmem [shape: f32[50,4], index: 7, kind: output, shape index: {0}]
  %s8 = inlined_call_operand.vmem [shape: f32[50,1], index: 8, kind: output, shape index: {1}]
  %9 = xla_tuple %s7, %s8
  %s10 = sld [smem:[#allocation0]]
  $region165: #{tpu_custom_call.1} parent=0
    _
  %s12 = ssub.s32 1, %s10
  %s13 = scalar_select 0, %s12, %s10
  $region1: #{tpu_custom_call.1} parent=0
    #allocation2 [shape = 'u8[32768]{0}', space=vmem, size = 0x8000, scoped, tag = 'output window, operand 0']
    #allocation3 [shape = 'u8[32768]{0}', space=vmem, size = 0x8000, scoped, tag = 'output window, operand 1']
    loop: start=0, step=1, limit=4
    $region2: #{tpu_custom_call.1} parent=1 // loop_pre_header
      _
    $region3: #{tpu_custom_call.1} parent=1 // loop_header
      %s15 = sphi 0, %s19
      %p16 = scmp.ge.s32.totalorder %s15, 4
      %s25 = sphi 0, %s27
      %s28 = sphi 0, %s25
      %s29 = sphi 0, %s28
      %s45 = sphi 0, %s29
      %s49 = sphi 0, %s49
      %s51 = sphi 0, %s49
      %s52 = sphi 0, %s51
      %s66 = sphi 0, %s52
      %s70 = sphi 0, %s70
      %s72 = sphi 0, %s70
      %s73 = sphi 0, %s72
      %s87 = sphi 0, %s73
      %s91 = sphi 0, %s91
      %s93 = sphi 0, %s91
      %s94 = sphi 0, %s93
      %s108 = sphi 0, %s94
      %s112 = sphi 0, %s112
      %s114 = sphi 0, %s112
      %s115 = sphi 0, %s114
      %s129 = sphi 0, %s115
      %s133 = sphi 0, %s133
      %s135 = sphi 0, %s133
      %s136 = sphi 0, %s135
      %s150 = sphi 0, %s136
      %s154 = sphi 0, %s154
      %s156 = sphi 0, %s154
      %s157 = sphi 0, %s156
      %s171 = sphi 0, %s157
      %s177 = sphi 0, %s179
      %s180 = sphi 0, %s177
      %s181 = sphi 0, %s180
      %s197 = sphi 0, %s181
      %s203 = sphi 0, %s205
      %s206 = sphi 0, %s203
      %s207 = sphi 0, %s206
      %s223 = sphi 0, %s207
    $region4: #{tpu_custom_call.1} parent=1 // loop_header_branch
      %18 = sbr.rel (%p16) target = $region8
    $region5: #{tpu_custom_call.1} parent=1 // loop_body
      %s20 = ssub.s32 %s15, 1
      %s21 = ssub.s32 %s15, 2
      %s22 = sadd.s32 %s15, 1
      %s23 = ssub.s32 %s15, %s22
      %p24 = scmp.eq.s32.totalorder %s23, 0
      %s26 = sadd.s32 %s25, 1
      %s27 = scalar_select %p24, %s25, %s26
      %p30 = pneg %p24
      %p31 = scmp.eq.s32.totalorder %s15, 1
      %p32 = por %p30, %p31
      %p33 = scmp.ne.s32.totalorder %s25, %s28
      %p34 = scmp.eq.s32.totalorder %s15, 0
      %p35 = por %p33, %p34
      %p36 = scmp.ne.s32.totalorder %s25, %s28
      %p37 = scmp.eq.s32.totalorder %s20, 1
      %p38 = por %p36, %p37
      %p39 = scmp.ne.s32.totalorder %s28, %s29
      %p40 = scmp.eq.s32.totalorder %s20, 0
      %p41 = por %p39, %p40
      %p42 = scmp.ne.s32.totalorder %s28, %s29
      %p43 = scmp.eq.s32.totalorder %s21, 1
      %p44 = por %p42, %p43
      %p46 = scmp.ne.s32.totalorder %s29, %s45
      %p47 = scmp.eq.s32.totalorder %s21, 0
      %p48 = por %p46, %p47
      %s50 = sadd.s32 %s49, 1
      %p53 = scmp.eq.s32.totalorder %s15, 1
      %p54 = scmp.ne.s32.totalorder %s49, %s51
      %p55 = scmp.eq.s32.totalorder %s15, 0
      %p56 = por %p54, %p55
      %p57 = scmp.ne.s32.totalorder %s49, %s51
      %p58 = scmp.eq.s32.totalorder %s20, 1
      %p59 = por %p57, %p58
      %p60 = scmp.ne.s32.totalorder %s51, %s52
      %p61 = scmp.eq.s32.totalorder %s20, 0
      %p62 = por %p60, %p61
      %p63 = scmp.ne.s32.totalorder %s51, %s52
      %p64 = scmp.eq.s32.totalorder %s21, 1
      %p65 = por %p63, %p64
      %p67 = scmp.ne.s32.totalorder %s52, %s66
      %p68 = scmp.eq.s32.totalorder %s21, 0
      %p69 = por %p67, %p68
      %s71 = sadd.s32 %s70, 1
      %p74 = scmp.eq.s32.totalorder %s15, 1
      %p75 = scmp.ne.s32.totalorder %s70, %s72
      %p76 = scmp.eq.s32.totalorder %s15, 0
      %p77 = por %p75, %p76
      %p78 = scmp.ne.s32.totalorder %s70, %s72
      %p79 = scmp.eq.s32.totalorder %s20, 1
      %p80 = por %p78, %p79
      %p81 = scmp.ne.s32.totalorder %s72, %s73
      %p82 = scmp.eq.s32.totalorder %s20, 0
      %p83 = por %p81, %p82
      %p84 = scmp.ne.s32.totalorder %s72, %s73
      %p85 = scmp.eq.s32.totalorder %s21, 1
      %p86 = por %p84, %p85
      %p88 = scmp.ne.s32.totalorder %s73, %s87
      %p89 = scmp.eq.s32.totalorder %s21, 0
      %p90 = por %p88, %p89
      %s92 = sadd.s32 %s91, 1
      %p95 = scmp.eq.s32.totalorder %s15, 1
      %p96 = scmp.ne.s32.totalorder %s91, %s93
      %p97 = scmp.eq.s32.totalorder %s15, 0
      %p98 = por %p96, %p97
      %p99 = scmp.ne.s32.totalorder %s91, %s93
      %p100 = scmp.eq.s32.totalorder %s20, 1
      %p101 = por %p99, %p100
      %p102 = scmp.ne.s32.totalorder %s93, %s94
      %p103 = scmp.eq.s32.totalorder %s20, 0
      %p104 = por %p102, %p103
      %p105 = scmp.ne.s32.totalorder %s93, %s94
      %p106 = scmp.eq.s32.totalorder %s21, 1
      %p107 = por %p105, %p106
      %p109 = scmp.ne.s32.totalorder %s94, %s108
      %p110 = scmp.eq.s32.totalorder %s21, 0
      %p111 = por %p109, %p110
      %s113 = sadd.s32 %s112, 1
      %p116 = scmp.eq.s32.totalorder %s15, 1
      %p117 = scmp.ne.s32.totalorder %s112, %s114
      %p118 = scmp.eq.s32.totalorder %s15, 0
      %p119 = por %p117, %p118
      %p120 = scmp.ne.s32.totalorder %s112, %s114
      %p121 = scmp.eq.s32.totalorder %s20, 1
      %p122 = por %p120, %p121
      %p123 = scmp.ne.s32.totalorder %s114, %s115
      %p124 = scmp.eq.s32.totalorder %s20, 0
      %p125 = por %p123, %p124
      %p126 = scmp.ne.s32.totalorder %s114, %s115
      %p127 = scmp.eq.s32.totalorder %s21, 1
      %p128 = por %p126, %p127
      %p130 = scmp.ne.s32.totalorder %s115, %s129
      %p131 = scmp.eq.s32.totalorder %s21, 0
      %p132 = por %p130, %p131
      %s134 = sadd.s32 %s133, 1
      %p137 = scmp.eq.s32.totalorder %s15, 1
      %p138 = scmp.ne.s32.totalorder %s133, %s135
      %p139 = scmp.eq.s32.totalorder %s15, 0
      %p140 = por %p138, %p139
      %p141 = scmp.ne.s32.totalorder %s133, %s135
      %p142 = scmp.eq.s32.totalorder %s20, 1
      %p143 = por %p141, %p142
      %p144 = scmp.ne.s32.totalorder %s135, %s136
      %p145 = scmp.eq.s32.totalorder %s20, 0
      %p146 = por %p144, %p145
      %p147 = scmp.ne.s32.totalorder %s135, %s136
      %p148 = scmp.eq.s32.totalorder %s21, 1
      %p149 = por %p147, %p148
      %p151 = scmp.ne.s32.totalorder %s136, %s150
      %p152 = scmp.eq.s32.totalorder %s21, 0
      %p153 = por %p151, %p152
      %s155 = sadd.s32 %s154, 1
      %p158 = scmp.eq.s32.totalorder %s15, 1
      %p159 = scmp.ne.s32.totalorder %s154, %s156
      %p160 = scmp.eq.s32.totalorder %s15, 0
      %p161 = por %p159, %p160
      %p162 = scmp.ne.s32.totalorder %s154, %s156
      %p163 = scmp.eq.s32.totalorder %s20, 1
      %p164 = por %p162, %p163
      %p165 = scmp.ne.s32.totalorder %s156, %s157
      %p166 = scmp.eq.s32.totalorder %s20, 0
      %p167 = por %p165, %p166
      %p168 = scmp.ne.s32.totalorder %s156, %s157
      %p169 = scmp.eq.s32.totalorder %s21, 1
      %p170 = por %p168, %p169
      %p172 = scmp.ne.s32.totalorder %s157, %s171
      %p173 = scmp.eq.s32.totalorder %s21, 0
      %p174 = por %p172, %p173
      %s175 = ssub.s32 %s15, %s22
      %p176 = scmp.eq.s32.totalorder %s175, 0
      %s178 = sadd.s32 %s177, 1
      %s179 = scalar_select %p176, %s177, %s178
      %p182 = pneg %p176
      %p183 = scmp.eq.s32.totalorder %s15, 1
      %p184 = por %p182, %p183
      %p185 = scmp.ne.s32.totalorder %s177, %s180
      %p186 = scmp.eq.s32.totalorder %s15, 0
      %p187 = por %p185, %p186
      %p188 = scmp.ne.s32.totalorder %s177, %s180
      %p189 = scmp.eq.s32.totalorder %s20, 1
      %p190 = por %p188, %p189
      %p191 = scmp.ne.s32.totalorder %s180, %s181
      %p192 = scmp.eq.s32.totalorder %s20, 0
      %p193 = por %p191, %p192
      %p194 = scmp.ne.s32.totalorder %s180, %s181
      %p195 = scmp.eq.s32.totalorder %s21, 1
      %p196 = por %p194, %p195
      %p198 = scmp.ne.s32.totalorder %s181, %s197
      %p199 = scmp.eq.s32.totalorder %s21, 0
      %p200 = por %p198, %p199
      %s201 = ssub.s32 %s15, %s22
      %p202 = scmp.eq.s32.totalorder %s201, 0
      %s204 = sadd.s32 %s203, 1
      %s205 = scalar_select %p202, %s203, %s204
      %p208 = pneg %p202
      %p209 = scmp.eq.s32.totalorder %s15, 1
      %p210 = por %p208, %p209
      %p211 = scmp.ne.s32.totalorder %s203, %s206
      %p212 = scmp.eq.s32.totalorder %s15, 0
      %p213 = por %p211, %p212
      %p214 = scmp.ne.s32.totalorder %s203, %s206
      %p215 = scmp.eq.s32.totalorder %s20, 1
      %p216 = por %p214, %p215
      %p217 = scmp.ne.s32.totalorder %s206, %s207
      %p218 = scmp.eq.s32.totalorder %s20, 0
      %p219 = por %p217, %p218
      %p220 = scmp.ne.s32.totalorder %s206, %s207
      %p221 = scmp.eq.s32.totalorder %s21, 1
      %p222 = por %p220, %p221
      %p224 = scmp.ne.s32.totalorder %s207, %s223
      %p225 = scmp.eq.s32.totalorder %s21, 0
      %p226 = por %p224, %p225
      %p227 = scmp.le.s32.totalorder 1, %s15
      %p228 = scmp.lt.s32.totalorder %s15, 3
      %p229 = pnand %p227, %p228
      %p230 = pneg %p229
      // Predicated region
      $region9: #{tpu_custom_call.1} parent=5 // pred_check
        _
      $region10: #{tpu_custom_call.1} parent=5 // pred_check_branch
        %232 = sbr.rel (%p229) target = $region12
      $region11: #{tpu_custom_call.1} parent=5 // pred_region
        %s233 = ssub.s32 %s15, 1
        // Predicated region
        $region13: #{tpu_custom_call.1} parent=11 // pred_check
          %p234 = pneg %p62
        $region14: #{tpu_custom_call.1} parent=11 // pred_check_branch
          %236 = sbr.rel (%p234) target = $region16
        $region15: #{tpu_custom_call.1} parent=11 // pred_region
          _
        $region16: #{tpu_custom_call.1} parent=11 // pred_fallthru
          _
        // Predicated region
        $region17: #{tpu_custom_call.1} parent=11 // pred_check
          %p237 = pneg %p83
        $region18: #{tpu_custom_call.1} parent=11 // pred_check_branch
          %239 = sbr.rel (%p237) target = $region20
        $region19: #{tpu_custom_call.1} parent=11 // pred_region
          _
        $region20: #{tpu_custom_call.1} parent=11 // pred_fallthru
          _
        // Predicated region
        $region21: #{tpu_custom_call.1} parent=11 // pred_check
          %p240 = pneg %p104
        $region22: #{tpu_custom_call.1} parent=11 // pred_check_branch
          %242 = sbr.rel (%p240) target = $region24
        $region23: #{tpu_custom_call.1} parent=11 // pred_region
          _
        $region24: #{tpu_custom_call.1} parent=11 // pred_fallthru
          _
        // Predicated region
        $region25: #{tpu_custom_call.1} parent=11 // pred_check
          %p243 = pneg %p125
        $region26: #{tpu_custom_call.1} parent=11 // pred_check_branch
          %245 = sbr.rel (%p243) target = $region28
        $region27: #{tpu_custom_call.1} parent=11 // pred_region
          _
        $region28: #{tpu_custom_call.1} parent=11 // pred_fallthru
          _
        // Predicated region
        $region29: #{tpu_custom_call.1} parent=11 // pred_check
          %p246 = pneg %p146
        $region30: #{tpu_custom_call.1} parent=11 // pred_check_branch
          %248 = sbr.rel (%p246) target = $region32
        $region31: #{tpu_custom_call.1} parent=11 // pred_region
          _
        $region32: #{tpu_custom_call.1} parent=11 // pred_fallthru
          _
        // Predicated region
        $region33: #{tpu_custom_call.1} parent=11 // pred_check
          %p249 = pneg %p167
        $region34: #{tpu_custom_call.1} parent=11 // pred_check_branch
          %251 = sbr.rel (%p249) target = $region36
        $region35: #{tpu_custom_call.1} parent=11 // pred_region
          _
        $region36: #{tpu_custom_call.1} parent=11 // pred_fallthru
          _
      $region12: #{tpu_custom_call.1} parent=5 // pred_fallthru
        _
      %p252 = scmp.lt.s32.totalorder %s15, 2
      // Predicated region
      $region37: #{tpu_custom_call.1} parent=5 // pred_check
        %p253 = pneg %p252
      $region38: #{tpu_custom_call.1} parent=5 // pred_check_branch
        %255 = sbr.rel (%p253) target = $region40
      $region39: #{tpu_custom_call.1} parent=5 // pred_region
        // Predicated region
        $region41: #{tpu_custom_call.1} parent=39 // pred_check
          %p256 = pneg %p35
        $region42: #{tpu_custom_call.1} parent=39 // pred_check_branch
          %258 = sbr.rel (%p256) target = $region44
        $region43: #{tpu_custom_call.1} parent=39 // pred_region
          %s259 = smul.u32 4, %s15
          %s260 = ssub.s32 7, %s259
          %p261 = scmp.lt.s32.totalorder %s260, 4
          %s262 = scalar_select %p261, %s260, 4
          %s263 = smul.u32 128, %s262
          %p264 = scmp.lt.s32.totalorder %s259, 6
          %s265 = scalar_select %p264, %s259, 6
          %s266 = smul.addr %s265, 8
          %s267 = scalar_lea.vmem %s0, %s266
          %s268 = smul.u32 4, %s15
          %s269 = ssub.s32 7, %s268
          %p270 = scmp.lt.s32.totalorder %s269, 4
          %s271 = scalar_select %p270, %s269, 4
          %s272 = smul.u32 128, %s271
        $region44: #{tpu_custom_call.1} parent=39 // pred_fallthru
          _
      $region40: #{tpu_custom_call.1} parent=5 // pred_fallthru
        _
      %p273 = scmp.le.s32.totalorder 1, %s15
      %p274 = scmp.lt.s32.totalorder %s15, 3
      %p275 = pnand %p273, %p274
      %p276 = pneg %p275
      // Predicated region
      $region45: #{tpu_custom_call.1} parent=5 // pred_check
        _
      $region46: #{tpu_custom_call.1} parent=5 // pred_check_branch
        %278 = sbr.rel (%p275) target = $region48
      $region47: #{tpu_custom_call.1} parent=5 // pred_region
        %s279 = ssub.s32 %s15, 1
        %s280 = smul.u32 4, %s20
        %s281 = ssub.s32 7, %s280
        %p282 = scmp.lt.s32.totalorder %s281, 4
        %s283 = scalar_select %p282, %s281, 4
        %s284 = smul.u32 128, %s283
        %p285 = scmp.lt.s32.totalorder %s280, 6
        %s286 = scalar_select %p285, %s280, 6
        %s287 = smul.addr %s286, 8
        %s288 = scalar_lea.vmem %s0, %s287
        %p289 = pneg %p41
        %p290 = pneg %p38
        %p291 = pneg %p62
        %p292 = pneg %p59
        %p293 = pneg %p83
        %p294 = pneg %p80
        %p295 = pneg %p104
        %p296 = pneg %p101
        %p297 = pneg %p125
        %p298 = pneg %p122
        %p299 = pneg %p146
        %p300 = pneg %p143
        %p301 = pneg %p167
        %p302 = pneg %p164
        %p303 = pneg %p193
        %p304 = pneg %p190
        %s305 = sand.u32 %s180, 1
        %s306 = sand.u32 %s180, 1
        %s307 = smul.addr %s306, 32
        %s308 = scalar_lea.vmem [#allocation2], %s307
        %p309 = pneg %p219
        %p310 = pneg %p216
        %s311 = sand.u32 %s206, 1
        %s312 = sand.u32 %s206, 1
        %s313 = smul.addr %s312, 32
        %s314 = scalar_lea.vmem [#allocation3], %s313
        %s315 = smul.u32 4, %s20
        %s316 = ssub.s32 7, %s315
        %p317 = scmp.lt.s32.totalorder %s316, 4
        %s318 = scalar_select %p317, %s316, 4
        %s319 = smul.u32 128, %s318
        %p320 = scmp.lt.s32.totalorder %s315, 6
        %s321 = scalar_select %p320, %s315, 6
        %s322 = smul.addr %s321, 8
        %s323 = scalar_lea.vmem %s0, %s322
        %s324 = smul.u32 4, %s20
        %s325 = ssub.s32 7, %s324
        %p326 = scmp.lt.s32.totalorder %s325, 4
        %s327 = scalar_select %p326, %s325, 4
        %s328 = smul.u32 128, %s327
        %s329 = smul.u32 4, %s20
        %s330 = ssub.s32 7, %s329
        %p331 = scmp.lt.s32.totalorder %s330, 4
        %s332 = scalar_select %p331, %s330, 4
        %s333 = smul.u32 128, %s332
        %s334 = smul.u32 4, %s20
        %s335 = ssub.s32 7, %s334
        %p336 = scmp.lt.s32.totalorder %s335, 4
        %s337 = scalar_select %p336, %s335, 4
        %s338 = smul.u32 128, %s337
        %v339 = vld [vmem:[%s323] sm:$0xff]
        %v340 = vld [vmem:[%s323 + $0x8] sm:$0xff]
        %v341 = vld [vmem:[%s323 + $0x10] sm:$0xff]
        %v342 = vld [vmem:[%s323 + $0x18] sm:$0xff]
        %v343 = vld [vmem:[%s1] sm:$0xff]
        %v344 = vld [vmem:[%s1 + $0x8] sm:$0xff]
        %v345 = vld [vmem:[%s2] sm:$0x1]
        %v347 = vlaneseq
        %v348 = vshrl.u32 %v347, 7
        %v349 = vsub.s32 0, %v348
        %v350 = vrot.slane %v345, %v349
        %vm352 = vcmask 130048
        %v354 = vsel %vm352, %v339, 0
        %v357 = vsel %vm352, %v340, 0
        %v360 = vsel %vm352, %v341, 0
        %v363 = vsel %vm352, %v342, 0
        %365 = vmatprep.subr.mxu0 0.0
        %366 = vmatpush1.msra.mxu0 0.0
        %367 = vmatprep.subr.mxu0 0.0
        %368 = vmatpush1.msra.mxu0 0.0
        %369 = vmatprep.subr.mxu0 0.0
        %370 = vmatpush1.msra.mxu0 0.0
        %371 = vmatprep.subr.mxu0 0.0
        %372 = vmatpush1.msra.mxu0 0.0
        %373 = vmatprep.subr.mxu0 0.0
        %374 = vmatpush1.msra.mxu0 0.0
        %375 = vmatprep.subr.mxu0 0.0
        %376 = vmatpush1.msra.mxu0 0.0
        %377 = vmatprep.subr.mxu0 0.0
        %378 = vmatpush1.msra.mxu0 0.0
        %379 = vmatprep.subr.mxu0 0.0
        %380 = vmatpush1.msra.mxu0 0.0
        %381 = vmatprep.subr.mxu0 0.0
        %382 = vmatpush1.msra.mxu0 0.0
        %383 = vmatprep.subr.mxu0 0.0
        %384 = vmatpush1.msra.mxu0 0.0
        %385 = vmatprep.subr.mxu0 0.0
        %386 = vmatpush1.msra.mxu0 0.0
        %387 = vmatprep.subr.mxu0 0.0
        %388 = vmatpush1.msra.mxu0 0.0
        %389 = vmatprep.subr.mxu0 0.0
        %390 = vmatpush1.msra.mxu0 0.0
        %391 = vmatprep.subr.mxu0 0.0
        %392 = vmatpush1.msra.mxu0 0.0
        %393 = vmatprep.subr.mxu0 0.0
        %394 = vmatpush1.msra.mxu0 %v344
        %395 = vmatprep.subr.mxu0 0.0
        %396 = vmatpush1.msra.mxu0 %v343
        %397 = vmatprep.subr.mxu0 0.0
        %398 = vmatpush2.msra.mxu0 0.0
        %399 = vmatprep.subr.mxu0 0.0
        %400 = vmatpush2.msra.mxu0 0.0
        %401 = vmatprep.subr.mxu0 0.0
        %402 = vmatpush2.msra.mxu0 0.0
        %403 = vmatprep.subr.mxu0 0.0
        %404 = vmatpush2.msra.mxu0 0.0
        %405 = vmatprep.subr.mxu0 0.0
        %406 = vmatpush2.msra.mxu0 0.0
        %407 = vmatprep.subr.mxu0 0.0
        %408 = vmatpush2.msra.mxu0 0.0
        %409 = vmatprep.subr.mxu0 0.0
        %410 = vmatpush2.msra.mxu0 0.0
        %411 = vmatprep.subr.mxu0 0.0
        %412 = vmatpush2.msra.mxu0 0.0
        %413 = vmatprep.subr.mxu0 0.0
        %414 = vmatpush2.msra.mxu0 0.0
        %415 = vmatprep.subr.mxu0 0.0
        %416 = vmatpush2.msra.mxu0 0.0
        %417 = vmatprep.subr.mxu0 0.0
        %418 = vmatpush2.msra.mxu0 0.0
        %419 = vmatprep.subr.mxu0 0.0
        %420 = vmatpush2.msra.mxu0 0.0
        %421 = vmatprep.subr.mxu0 0.0
        %422 = vmatpush2.msra.mxu0 0.0
        %423 = vmatprep.subr.mxu0 0.0
        %424 = vmatpush2.msra.mxu0 0.0
        %425 = vmatprep.subr.mxu0 0.0
        %426 = vmatpush2.msra.mxu0 0.0
        %427 = vmatprep.subr.mxu0 0.0
        %428 = vmatpush2.msra.mxu0 0.0
        %429 = vmatprep.mubr.f32.mxu0 0.0
        %430 = vmatmul.mubr.f32.gmra.mxu0 %v354
        %v431 = vpop.f32.mrf.mxu0
        %v432 = vadd.f32 %v350, %v431
        %v433 = vpop.f32.mrf.mxu0
        %434 = vmatprep.mubr.f32.mxu0 0.0
        %435 = vmatmul.mubr.f32.gmra.mxu0 %v357
        %v436 = vpop.f32.mrf.mxu0
        %v437 = vadd.f32 %v350, %v436
        %v438 = vpop.f32.mrf.mxu0
        %439 = vmatprep.mubr.f32.mxu0 0.0
        %440 = vmatmul.mubr.f32.gmra.mxu0 %v360
        %v441 = vpop.f32.mrf.mxu0
        %v442 = vadd.f32 %v350, %v441
        %v443 = vpop.f32.mrf.mxu0
        %444 = vmatprep.mubr.f32.mxu0 0.0
        %445 = vmatmul.mubr.f32.gmra.mxu0 %v363
        %v446 = vpop.f32.mrf.mxu0
        %v447 = vadd.f32 %v350, %v446
        %v448 = vpop.f32.mrf.mxu0
        %449 = vdwg.mxu0
        %v450 = vmax.f32 %v432, 0.0
        %v451 = vmax.f32 %v437, 0.0
        %v452 = vmax.f32 %v442, 0.0
        %v453 = vmax.f32 %v447, 0.0
        %v454 = vld [vmem:[%s3] sm:$0xff]
        %v455 = vld [vmem:[%s3 + $0x8] sm:$0xff]
        %v456 = vld [vmem:[%s3 + $0x10] sm:$0xff]
        %v457 = vld [vmem:[%s3 + $0x18] sm:$0xff]
        %v458 = vld [vmem:[%s4] sm:$0x1]
        %v460 = vlaneseq
        %v461 = vshrl.u32 %v460, 7
        %v462 = vsub.s32 0, %v461
        %v463 = vrot.slane %v458, %v462
        %vm465 = vcmask 261120
        %v467 = vsel %vm465, %v450, 0
        %v470 = vsel %vm465, %v451, 0
        %v473 = vsel %vm465, %v452, 0
        %v476 = vsel %vm465, %v453, 0
        %478 = vmatprep.subr.mxu0 0.0
        %479 = vmatpush1.msra.mxu0 0.0
        %480 = vmatprep.subr.mxu0 0.0
        %481 = vmatpush1.msra.mxu0 0.0
        %482 = vmatprep.subr.mxu0 0.0
        %483 = vmatpush1.msra.mxu0 0.0
        %484 = vmatprep.subr.mxu0 0.0
        %485 = vmatpush1.msra.mxu0 0.0
        %486 = vmatprep.subr.mxu0 0.0
        %487 = vmatpush1.msra.mxu0 0.0
        %488 = vmatprep.subr.mxu0 0.0
        %489 = vmatpush1.msra.mxu0 0.0
        %490 = vmatprep.subr.mxu0 0.0
        %491 = vmatpush1.msra.mxu0 0.0
        %492 = vmatprep.subr.mxu0 0.0
        %493 = vmatpush1.msra.mxu0 0.0
        %494 = vmatprep.subr.mxu0 0.0
        %495 = vmatpush1.msra.mxu0 0.0
        %496 = vmatprep.subr.mxu0 0.0
        %497 = vmatpush1.msra.mxu0 0.0
        %498 = vmatprep.subr.mxu0 0.0
        %499 = vmatpush1.msra.mxu0 0.0
        %500 = vmatprep.subr.mxu0 0.0
        %501 = vmatpush1.msra.mxu0 0.0
        %502 = vmatprep.subr.mxu0 0.0
        %503 = vmatpush1.msra.mxu0 %v457
        %504 = vmatprep.subr.mxu0 0.0
        %505 = vmatpush1.msra.mxu0 %v456
        %506 = vmatprep.subr.mxu0 0.0
        %507 = vmatpush1.msra.mxu0 %v455
        %508 = vmatprep.subr.mxu0 0.0
        %509 = vmatpush1.msra.mxu0 %v454
        %510 = vmatprep.subr.mxu0 0.0
        %511 = vmatpush2.msra.mxu0 0.0
        %512 = vmatprep.subr.mxu0 0.0
        %513 = vmatpush2.msra.mxu0 0.0
        %514 = vmatprep.subr.mxu0 0.0
        %515 = vmatpush2.msra.mxu0 0.0
        %516 = vmatprep.subr.mxu0 0.0
        %517 = vmatpush2.msra.mxu0 0.0
        %518 = vmatprep.subr.mxu0 0.0
        %519 = vmatpush2.msra.mxu0 0.0
        %520 = vmatprep.subr.mxu0 0.0
        %521 = vmatpush2.msra.mxu0 0.0
        %522 = vmatprep.subr.mxu0 0.0
        %523 = vmatpush2.msra.mxu0 0.0
        %524 = vmatprep.subr.mxu0 0.0
        %525 = vmatpush2.msra.mxu0 0.0
        %526 = vmatprep.subr.mxu0 0.0
        %527 = vmatpush2.msra.mxu0 0.0
        %528 = vmatprep.subr.mxu0 0.0
        %529 = vmatpush2.msra.mxu0 0.0
        %530 = vmatprep.subr.mxu0 0.0
        %531 = vmatpush2.msra.mxu0 0.0
        %532 = vmatprep.subr.mxu0 0.0
        %533 = vmatpush2.msra.mxu0 0.0
        %534 = vmatprep.subr.mxu0 0.0
        %535 = vmatpush2.msra.mxu0 0.0
        %536 = vmatprep.subr.mxu0 0.0
        %537 = vmatpush2.msra.mxu0 0.0
        %538 = vmatprep.subr.mxu0 0.0
        %539 = vmatpush2.msra.mxu0 0.0
        %540 = vmatprep.subr.mxu0 0.0
        %541 = vmatpush2.msra.mxu0 0.0
        %542 = vmatprep.mubr.f32.mxu0 0.0
        %543 = vmatmul.mubr.f32.gmra.mxu0 %v467
        %v544 = vpop.f32.mrf.mxu0
        %v545 = vadd.f32 %v463, %v544
        %v546 = vpop.f32.mrf.mxu0
        %547 = vmatprep.mubr.f32.mxu0 0.0
        %548 = vmatmul.mubr.f32.gmra.mxu0 %v470
        %v549 = vpop.f32.mrf.mxu0
        %v550 = vadd.f32 %v463, %v549
        %v551 = vpop.f32.mrf.mxu0
        %552 = vmatprep.mubr.f32.mxu0 0.0
        %553 = vmatmul.mubr.f32.gmra.mxu0 %v473
        %v554 = vpop.f32.mrf.mxu0
        %v555 = vadd.f32 %v463, %v554
        %v556 = vpop.f32.mrf.mxu0
        %557 = vmatprep.mubr.f32.mxu0 0.0
        %558 = vmatmul.mubr.f32.gmra.mxu0 %v476
        %v559 = vpop.f32.mrf.mxu0
        %v560 = vadd.f32 %v463, %v559
        %v561 = vpop.f32.mrf.mxu0
        %562 = vdwg.mxu0
        %v563 = vmax.f32 %v545, 0.0
        %v564 = vmax.f32 %v550, 0.0
        %v565 = vmax.f32 %v555, 0.0
        %v566 = vmax.f32 %v560, 0.0
        %v567 = vld [vmem:[%s5] sm:$0xff]
        %v568 = vld [vmem:[%s5 + $0x8] sm:$0xff]
        %v569 = vld [vmem:[%s5 + $0x10] sm:$0xff]
        %v570 = vld [vmem:[%s5 + $0x18] sm:$0xff]
        %v571 = vld [vmem:[%s5 + $0x20] sm:$0xff]
        %v572 = vld [vmem:[%s5 + $0x28] sm:$0xff]
        %v573 = vld [vmem:[%s5 + $0x30] sm:$0xff]
        %v574 = vld [vmem:[%s5 + $0x38] sm:$0xff]
        %v575 = vld [vmem:[%s6] sm:$0x1]
        %v577 = vlaneseq
        %v578 = vshrl.u32 %v577, 7
        %v579 = vsub.s32 0, %v578
        %v580 = vrot.slane %v575, %v579
        %vm582 = vcmask 523264
        %v584 = vsel %vm582, %v563, 0
        %v587 = vsel %vm582, %v564, 0
        %v590 = vsel %vm582, %v565, 0
        %v593 = vsel %vm582, %v566, 0
        %595 = vmatprep.subr.mxu0 0.0
        %596 = vmatpush1.msra.mxu0 0.0
        %597 = vmatprep.subr.mxu0 0.0
        %598 = vmatpush1.msra.mxu0 0.0
        %599 = vmatprep.subr.mxu0 0.0
        %600 = vmatpush1.msra.mxu0 0.0
        %601 = vmatprep.subr.mxu0 0.0
        %602 = vmatpush1.msra.mxu0 0.0
        %603 = vmatprep.subr.mxu0 0.0
        %604 = vmatpush1.msra.mxu0 0.0
        %605 = vmatprep.subr.mxu0 0.0
        %606 = vmatpush1.msra.mxu0 0.0
        %607 = vmatprep.subr.mxu0 0.0
        %608 = vmatpush1.msra.mxu0 0.0
        %609 = vmatprep.subr.mxu0 0.0
        %610 = vmatpush1.msra.mxu0 0.0
        %611 = vmatprep.subr.mxu0 0.0
        %612 = vmatpush1.msra.mxu0 %v574
        %613 = vmatprep.subr.mxu0 0.0
        %614 = vmatpush1.msra.mxu0 %v573
        %615 = vmatprep.subr.mxu0 0.0
        %616 = vmatpush1.msra.mxu0 %v572
        %617 = vmatprep.subr.mxu0 0.0
        %618 = vmatpush1.msra.mxu0 %v571
        %619 = vmatprep.subr.mxu0 0.0
        %620 = vmatpush1.msra.mxu0 %v570
        %621 = vmatprep.subr.mxu0 0.0
        %622 = vmatpush1.msra.mxu0 %v569
        %623 = vmatprep.subr.mxu0 0.0
        %624 = vmatpush1.msra.mxu0 %v568
        %625 = vmatprep.subr.mxu0 0.0
        %626 = vmatpush1.msra.mxu0 %v567
        %627 = vmatprep.subr.mxu0 0.0
        %628 = vmatpush2.msra.mxu0 0.0
        %629 = vmatprep.subr.mxu0 0.0
        %630 = vmatpush2.msra.mxu0 0.0
        %631 = vmatprep.subr.mxu0 0.0
        %632 = vmatpush2.msra.mxu0 0.0
        %633 = vmatprep.subr.mxu0 0.0
        %634 = vmatpush2.msra.mxu0 0.0
        %635 = vmatprep.subr.mxu0 0.0
        %636 = vmatpush2.msra.mxu0 0.0
        %637 = vmatprep.subr.mxu0 0.0
        %638 = vmatpush2.msra.mxu0 0.0
        %639 = vmatprep.subr.mxu0 0.0
        %640 = vmatpush2.msra.mxu0 0.0
        %641 = vmatprep.subr.mxu0 0.0
        %642 = vmatpush2.msra.mxu0 0.0
        %643 = vmatprep.subr.mxu0 0.0
        %644 = vmatpush2.msra.mxu0 0.0
        %645 = vmatprep.subr.mxu0 0.0
        %646 = vmatpush2.msra.mxu0 0.0
        %647 = vmatprep.subr.mxu0 0.0
        %648 = vmatpush2.msra.mxu0 0.0
        %649 = vmatprep.subr.mxu0 0.0
        %650 = vmatpush2.msra.mxu0 0.0
        %651 = vmatprep.subr.mxu0 0.0
        %652 = vmatpush2.msra.mxu0 0.0
        %653 = vmatprep.subr.mxu0 0.0
        %654 = vmatpush2.msra.mxu0 0.0
        %655 = vmatprep.subr.mxu0 0.0
        %656 = vmatpush2.msra.mxu0 0.0
        %657 = vmatprep.subr.mxu0 0.0
        %658 = vmatpush2.msra.mxu0 0.0
        %659 = vmatprep.mubr.f32.mxu0 0.0
        %660 = vmatmul.mubr.f32.gmra.mxu0 %v584
        %v661 = vpop.f32.mrf.mxu0
        %v662 = vadd.f32 %v580, %v661
        %v663 = vpop.f32.mrf.mxu0
        %664 = vmatprep.mubr.f32.mxu0 0.0
        %665 = vmatmul.mubr.f32.gmra.mxu0 %v587
        %v666 = vpop.f32.mrf.mxu0
        %v667 = vadd.f32 %v580, %v666
        %v668 = vpop.f32.mrf.mxu0
        %669 = vmatprep.mubr.f32.mxu0 0.0
        %670 = vmatmul.mubr.f32.gmra.mxu0 %v590
        %v671 = vpop.f32.mrf.mxu0
        %v672 = vadd.f32 %v580, %v671
        %v673 = vpop.f32.mrf.mxu0
        %674 = vmatprep.mubr.f32.mxu0 0.0
        %675 = vmatmul.mubr.f32.gmra.mxu0 %v593
        %v676 = vpop.f32.mrf.mxu0
        %v677 = vadd.f32 %v580, %v676
        %v678 = vpop.f32.mrf.mxu0
        %679 = vdwg.mxu0
        %vm680 = vcmask 31744
        %681 = vst.msk [vmem:[%s308] sm:$0xff] %vm680, %v662
        %682 = vst.msk [vmem:[%s308 + $0x8] sm:$0xff] %vm680, %v667
        %683 = vst.msk [vmem:[%s308 + $0x10] sm:$0xff] %vm680, %v672
        %684 = vst.msk [vmem:[%s308 + $0x18] sm:$0xff] %vm680, %v677
        %689 = vrot.lane.b32.xlu0 %v662, 124
        %v690 = vpop.permute.xlu0 %689
        %691 = vrot.lane.b32.xlu0 %v667, 124
        %v692 = vpop.permute.xlu0 %691
        %693 = vrot.lane.b32.xlu0 %v672, 124
        %v694 = vpop.permute.xlu0 %693
        %695 = vrot.lane.b32.xlu0 %v677, 124
        %v696 = vpop.permute.xlu0 %695
        %vm701 = vcmask 7168
        %702 = vst.msk [vmem:[%s314] sm:$0xff] %vm701, %v690
        %703 = vst.msk [vmem:[%s314 + $0x8] sm:$0xff] %vm701, %v692
        %704 = vst.msk [vmem:[%s314 + $0x10] sm:$0xff] %vm701, %v694
        %705 = vst.msk [vmem:[%s314 + $0x18] sm:$0xff] %vm701, %v696
        %s706 = sand.u32 %s180, 1
        %s707 = sand.u32 %s180, 1
        %s708 = smul.addr %s707, 32
        %s709 = scalar_lea.vmem [#allocation2], %s708
        %s710 = sand.u32 %s206, 1
        %s711 = sand.u32 %s206, 1
        %s712 = smul.addr %s711, 32
        %s713 = scalar_lea.vmem [#allocation3], %s712
        // Predicated region
        $region49: #{tpu_custom_call.1} parent=47 // pred_check
          %p714 = pneg %p190
        $region50: #{tpu_custom_call.1} parent=47 // pred_check_branch
          %716 = sbr.rel (%p714) target = $region52
        $region51: #{tpu_custom_call.1} parent=47 // pred_region
          %s717 = smul.u32 4, %s20
          %s718 = ssub.s32 7, %s717
          %p719 = scmp.lt.s32.totalorder %s718, 4
          %s720 = scalar_select %p719, %s718, 4
          %s721 = smul.u32 128, %s720
          %p722 = scmp.ne.s32.totalorder 0, %s721
          %s723 = smul.addr %s717, 8
          %s724 = scalar_lea.vmem %s7, %s723
          // Predicated region
          $region53: #{tpu_custom_call.1} parent=51 // pred_check
            %p725 = pneg %p722
          $region54: #{tpu_custom_call.1} parent=51 // pred_check_branch
            %727 = sbr.rel (%p725) target = $region56
          $region55: #{tpu_custom_call.1} parent=51 // pred_region
            // Predicated region
            $region57: #{tpu_custom_call.1} parent=55 // pred_check
              _
            $region58: #{tpu_custom_call.1} parent=55 // pred_check_branch
              %729 = sbr.rel (0) target = $region60
            $region59: #{tpu_custom_call.1} parent=55 // pred_region
              // Predicated region
              $region79: #{tpu_custom_call.1} parent=59 // pred_check
                _
              $region80: #{tpu_custom_call.1} parent=59 // pred_check_branch
                %785 = sbr.rel (0) target = $region82
              $region81: #{tpu_custom_call.1} parent=59 // pred_region
                %s786 = sshrl.u32 %s720, 2
                // While loop
                $region83: #{tpu_custom_call.1} parent=81 // loop_pre_header
                  _
                $region84: #{tpu_custom_call.1} parent=81 // loop_header
                  %s788 = sphi 0, %s790
                  %p789 = scmp.ge.s32.totalorder %s788, %s786
                  %s793 = sphi 0, %s806
                  %s794 = sphi %s709, %s809
                  %s795 = sphi %s724, %s810
                $region85: #{tpu_custom_call.1} parent=81 // loop_header_branch
                  %792 = sbr.rel (%p789) target = $region89
                $region86: #{tpu_custom_call.1} parent=81 // loop_body
                  %v796 = vld [vmem:[%s794] sm:$0xff]
                  %797 = vst [vmem:[%s795] sm:$0xff] %v796
                  %v798 = vld [vmem:[%s794 + $0x8] sm:$0xff]
                  %799 = vst [vmem:[%s795 + $0x8] sm:$0xff] %v798
                  %v800 = vld [vmem:[%s794 + $0x10] sm:$0xff]
                  %801 = vst [vmem:[%s795 + $0x10] sm:$0xff] %v800
                  %v802 = vld [vmem:[%s794 + $0x18] sm:$0xff]
                  %803 = vst [vmem:[%s795 + $0x18] sm:$0xff] %v802
                  %s804 = sadd.s32 1, %s793
                  %p805 = scmp.ge.s32.totalorder %s804, %s786
                  %s806 = scalar_select %p805, 0, %s804
                  %s807 = smul.u32 %s806, 32
                  %s808 = smul.u32 %s806, 32
                  %s809 = scalar_lea.vmem %s709, %s807 [#allocation2]
                  %s810 = scalar_lea.vmem %s724, %s808
                $region87: #{tpu_custom_call.1} parent=81 // loop_footer
                  %s790 = sadd.s32 %s788, 1
                $region88: #{tpu_custom_call.1} parent=81 // loop_footer_branch
                  %787 = sbr.rel target = $region84
                $region89: #{tpu_custom_call.1} parent=81 // loop_exit
                  _
                %s811 = sshrl.u32 %s720, 2
                %s812 = sand.u32 %s720, 3
                %s813 = smul.u32 %s811, 4
                %s814 = smul.u32 8, %s813
                %s815 = scalar_lea.vmem %s709, %s814 [#allocation2]
                %s816 = smul.u32 8, %s813
                %s817 = scalar_lea.vmem %s724, %s816
                // While loop
                $region90: #{tpu_custom_call.1} parent=81 // loop_pre_header
                  _
                $region91: #{tpu_custom_call.1} parent=81 // loop_header
                  %s819 = sphi 0, %s821
                  %p820 = scmp.ge.s32.totalorder %s819, %s812
                  %s824 = sphi 0, %s831
                  %s825 = sphi %s815, %s834
                  %s826 = sphi %s817, %s835
                $region92: #{tpu_custom_call.1} parent=81 // loop_header_branch
                  %823 = sbr.rel (%p820) target = $region96
                $region93: #{tpu_custom_call.1} parent=81 // loop_body
                  %v827 = vld [vmem:[%s825] sm:$0xff]
                  %828 = vst [vmem:[%s826] sm:$0xff] %v827
                  %s829 = sadd.s32 1, %s824
                  %p830 = scmp.ge.s32.totalorder %s829, %s812
                  %s831 = scalar_select %p830, 0, %s829
                  %s832 = smul.u32 %s831, 8
                  %s833 = smul.u32 %s831, 8
                  %s834 = scalar_lea.vmem %s815, %s832 [#allocation2]
                  %s835 = scalar_lea.vmem %s817, %s833
                $region94: #{tpu_custom_call.1} parent=81 // loop_footer
                  %s821 = sadd.s32 %s819, 1
                $region95: #{tpu_custom_call.1} parent=81 // loop_footer_branch
                  %818 = sbr.rel target = $region91
                $region96: #{tpu_custom_call.1} parent=81 // loop_exit
                  _
              $region82: #{tpu_custom_call.1} parent=59 // pred_fallthru
                _
              // Predicated region
              $region97: #{tpu_custom_call.1} parent=59 // pred_check
                _
              $region98: #{tpu_custom_call.1} parent=59 // pred_check_branch
                %837 = sbr.rel target = $region100
              $region99: #{tpu_custom_call.1} parent=59 // pred_region
                _
              $region100: #{tpu_custom_call.1} parent=59 // pred_fallthru
                _
            $region60: #{tpu_custom_call.1} parent=55 // pred_fallthru
              _
            // Predicated region
            $region61: #{tpu_custom_call.1} parent=55 // pred_check
              _
            $region62: #{tpu_custom_call.1} parent=55 // pred_check_branch
              %731 = sbr.rel target = $region64
            $region63: #{tpu_custom_call.1} parent=55 // pred_region
              %s733 = ssub.s32 256, 1
              %s734 = sshrl.u32 %s720, 2
              // While loop
              $region65: #{tpu_custom_call.1} parent=63 // loop_pre_header
                _
              $region66: #{tpu_custom_call.1} parent=63 // loop_header
                %s736 = sphi 0, %s738
                %p737 = scmp.ge.s32.totalorder %s736, %s734
                %s741 = sphi 0, %s754
                %s742 = sphi %s709, %s757
                %s743 = sphi %s724, %s758
              $region67: #{tpu_custom_call.1} parent=63 // loop_header_branch
                %740 = sbr.rel (%p737) target = $region71
              $region68: #{tpu_custom_call.1} parent=63 // loop_body
                %v744 = vld [vmem:[%s742] sm:%s733]
                %745 = vst [vmem:[%s743] sm:%s733] %v744
                %v746 = vld [vmem:[%s742 + $0x8] sm:%s733]
                %747 = vst [vmem:[%s743 + $0x8] sm:%s733] %v746
                %v748 = vld [vmem:[%s742 + $0x10] sm:%s733]
                %749 = vst [vmem:[%s743 + $0x10] sm:%s733] %v748
                %v750 = vld [vmem:[%s742 + $0x18] sm:%s733]
                %751 = vst [vmem:[%s743 + $0x18] sm:%s733] %v750
                %s752 = sadd.s32 1, %s741
                %p753 = scmp.ge.s32.totalorder %s752, %s734
                %s754 = scalar_select %p753, 0, %s752
                %s755 = smul.u32 %s754, 32
                %s756 = smul.u32 %s754, 32
                %s757 = scalar_lea.vmem %s709, %s755 [#allocation2]
                %s758 = scalar_lea.vmem %s724, %s756
              $region69: #{tpu_custom_call.1} parent=63 // loop_footer
                %s738 = sadd.s32 %s736, 1
              $region70: #{tpu_custom_call.1} parent=63 // loop_footer_branch
                %735 = sbr.rel target = $region66
              $region71: #{tpu_custom_call.1} parent=63 // loop_exit
                _
              %s759 = sshrl.u32 %s720, 2
              %s760 = sand.u32 %s720, 3
              %s761 = smul.u32 %s759, 4
              %s762 = smul.u32 8, %s761
              %s763 = scalar_lea.vmem %s709, %s762 [#allocation2]
              %s764 = smul.u32 8, %s761
              %s765 = scalar_lea.vmem %s724, %s764
              // While loop
              $region72: #{tpu_custom_call.1} parent=63 // loop_pre_header
                _
              $region73: #{tpu_custom_call.1} parent=63 // loop_header
                %s767 = sphi 0, %s769
                %p768 = scmp.ge.s32.totalorder %s767, %s760
                %s772 = sphi 0, %s779
                %s773 = sphi %s763, %s782
                %s774 = sphi %s765, %s783
              $region74: #{tpu_custom_call.1} parent=63 // loop_header_branch
                %771 = sbr.rel (%p768) target = $region78
              $region75: #{tpu_custom_call.1} parent=63 // loop_body
                %v775 = vld [vmem:[%s773] sm:%s733]
                %776 = vst [vmem:[%s774] sm:%s733] %v775
                %s777 = sadd.s32 1, %s772
                %p778 = scmp.ge.s32.totalorder %s777, %s760
                %s779 = scalar_select %p778, 0, %s777
                %s780 = smul.u32 %s779, 8
                %s781 = smul.u32 %s779, 8
                %s782 = scalar_lea.vmem %s763, %s780 [#allocation2]
                %s783 = scalar_lea.vmem %s765, %s781
              $region76: #{tpu_custom_call.1} parent=63 // loop_footer
                %s769 = sadd.s32 %s767, 1
              $region77: #{tpu_custom_call.1} parent=63 // loop_footer_branch
                %766 = sbr.rel target = $region73
              $region78: #{tpu_custom_call.1} parent=63 // loop_exit
                _
            $region64: #{tpu_custom_call.1} parent=55 // pred_fallthru
              _
          $region56: #{tpu_custom_call.1} parent=51 // pred_fallthru
            _
          %838 = vnop
        $region52: #{tpu_custom_call.1} parent=47 // pred_fallthru
          _
        // Predicated region
        $region101: #{tpu_custom_call.1} parent=47 // pred_check
          %p839 = pneg %p216
        $region102: #{tpu_custom_call.1} parent=47 // pred_check_branch
          %841 = sbr.rel (%p839) target = $region104
        $region103: #{tpu_custom_call.1} parent=47 // pred_region
          %s842 = smul.u32 4, %s20
          %s843 = ssub.s32 7, %s842
          %p844 = scmp.lt.s32.totalorder %s843, 4
          %s845 = scalar_select %p844, %s843, 4
          %s846 = smul.u32 128, %s845
          %p847 = scmp.ne.s32.totalorder 0, %s846
          %s848 = smul.addr %s842, 8
          %s849 = scalar_lea.vmem %s8, %s848
          // Predicated region
          $region105: #{tpu_custom_call.1} parent=103 // pred_check
            %p850 = pneg %p847
          $region106: #{tpu_custom_call.1} parent=103 // pred_check_branch
            %852 = sbr.rel (%p850) target = $region108
          $region107: #{tpu_custom_call.1} parent=103 // pred_region
            // Predicated region
            $region109: #{tpu_custom_call.1} parent=107 // pred_check
              _
            $region110: #{tpu_custom_call.1} parent=107 // pred_check_branch
              %854 = sbr.rel (0) target = $region112
            $region111: #{tpu_custom_call.1} parent=107 // pred_region
              // Predicated region
              $region131: #{tpu_custom_call.1} parent=111 // pred_check
                _
              $region132: #{tpu_custom_call.1} parent=111 // pred_check_branch
                %910 = sbr.rel (0) target = $region134
              $region133: #{tpu_custom_call.1} parent=111 // pred_region
                %s911 = sshrl.u32 %s845, 2
                // While loop
                $region135: #{tpu_custom_call.1} parent=133 // loop_pre_header
                  _
                $region136: #{tpu_custom_call.1} parent=133 // loop_header
                  %s913 = sphi 0, %s915
                  %p914 = scmp.ge.s32.totalorder %s913, %s911
                  %s918 = sphi 0, %s931
                  %s919 = sphi %s713, %s934
                  %s920 = sphi %s849, %s935
                $region137: #{tpu_custom_call.1} parent=133 // loop_header_branch
                  %917 = sbr.rel (%p914) target = $region141
                $region138: #{tpu_custom_call.1} parent=133 // loop_body
                  %v921 = vld [vmem:[%s919] sm:$0xff]
                  %922 = vst [vmem:[%s920] sm:$0xff] %v921
                  %v923 = vld [vmem:[%s919 + $0x8] sm:$0xff]
                  %924 = vst [vmem:[%s920 + $0x8] sm:$0xff] %v923
                  %v925 = vld [vmem:[%s919 + $0x10] sm:$0xff]
                  %926 = vst [vmem:[%s920 + $0x10] sm:$0xff] %v925
                  %v927 = vld [vmem:[%s919 + $0x18] sm:$0xff]
                  %928 = vst [vmem:[%s920 + $0x18] sm:$0xff] %v927
                  %s929 = sadd.s32 1, %s918
                  %p930 = scmp.ge.s32.totalorder %s929, %s911
                  %s931 = scalar_select %p930, 0, %s929
                  %s932 = smul.u32 %s931, 32
                  %s933 = smul.u32 %s931, 32
                  %s934 = scalar_lea.vmem %s713, %s932 [#allocation3]
                  %s935 = scalar_lea.vmem %s849, %s933
                $region139: #{tpu_custom_call.1} parent=133 // loop_footer
                  %s915 = sadd.s32 %s913, 1
                $region140: #{tpu_custom_call.1} parent=133 // loop_footer_branch
                  %912 = sbr.rel target = $region136
                $region141: #{tpu_custom_call.1} parent=133 // loop_exit
                  _
                %s936 = sshrl.u32 %s845, 2
                %s937 = sand.u32 %s845, 3
                %s938 = smul.u32 %s936, 4
                %s939 = smul.u32 8, %s938
                %s940 = scalar_lea.vmem %s713, %s939 [#allocation3]
                %s941 = smul.u32 8, %s938
                %s942 = scalar_lea.vmem %s849, %s941
                // While loop
                $region142: #{tpu_custom_call.1} parent=133 // loop_pre_header
                  _
                $region143: #{tpu_custom_call.1} parent=133 // loop_header
                  %s944 = sphi 0, %s946
                  %p945 = scmp.ge.s32.totalorder %s944, %s937
                  %s949 = sphi 0, %s956
                  %s950 = sphi %s940, %s959
                  %s951 = sphi %s942, %s960
                $region144: #{tpu_custom_call.1} parent=133 // loop_header_branch
                  %948 = sbr.rel (%p945) target = $region148
                $region145: #{tpu_custom_call.1} parent=133 // loop_body
                  %v952 = vld [vmem:[%s950] sm:$0xff]
                  %953 = vst [vmem:[%s951] sm:$0xff] %v952
                  %s954 = sadd.s32 1, %s949
                  %p955 = scmp.ge.s32.totalorder %s954, %s937
                  %s956 = scalar_select %p955, 0, %s954
                  %s957 = smul.u32 %s956, 8
                  %s958 = smul.u32 %s956, 8
                  %s959 = scalar_lea.vmem %s940, %s957 [#allocation3]
                  %s960 = scalar_lea.vmem %s942, %s958
                $region146: #{tpu_custom_call.1} parent=133 // loop_footer
                  %s946 = sadd.s32 %s944, 1
                $region147: #{tpu_custom_call.1} parent=133 // loop_footer_branch
                  %943 = sbr.rel target = $region143
                $region148: #{tpu_custom_call.1} parent=133 // loop_exit
                  _
              $region134: #{tpu_custom_call.1} parent=111 // pred_fallthru
                _
              // Predicated region
              $region149: #{tpu_custom_call.1} parent=111 // pred_check
                _
              $region150: #{tpu_custom_call.1} parent=111 // pred_check_branch
                %962 = sbr.rel target = $region152
              $region151: #{tpu_custom_call.1} parent=111 // pred_region
                _
              $region152: #{tpu_custom_call.1} parent=111 // pred_fallthru
                _
            $region112: #{tpu_custom_call.1} parent=107 // pred_fallthru
              _
            // Predicated region
            $region113: #{tpu_custom_call.1} parent=107 // pred_check
              _
            $region114: #{tpu_custom_call.1} parent=107 // pred_check_branch
              %856 = sbr.rel target = $region116
            $region115: #{tpu_custom_call.1} parent=107 // pred_region
              %s858 = ssub.s32 256, 1
              %s859 = sshrl.u32 %s845, 2
              // While loop
              $region117: #{tpu_custom_call.1} parent=115 // loop_pre_header
                _
              $region118: #{tpu_custom_call.1} parent=115 // loop_header
                %s861 = sphi 0, %s863
                %p862 = scmp.ge.s32.totalorder %s861, %s859
                %s866 = sphi 0, %s879
                %s867 = sphi %s713, %s882
                %s868 = sphi %s849, %s883
              $region119: #{tpu_custom_call.1} parent=115 // loop_header_branch
                %865 = sbr.rel (%p862) target = $region123
              $region120: #{tpu_custom_call.1} parent=115 // loop_body
                %v869 = vld [vmem:[%s867] sm:%s858]
                %870 = vst [vmem:[%s868] sm:%s858] %v869
                %v871 = vld [vmem:[%s867 + $0x8] sm:%s858]
                %872 = vst [vmem:[%s868 + $0x8] sm:%s858] %v871
                %v873 = vld [vmem:[%s867 + $0x10] sm:%s858]
                %874 = vst [vmem:[%s868 + $0x10] sm:%s858] %v873
                %v875 = vld [vmem:[%s867 + $0x18] sm:%s858]
                %876 = vst [vmem:[%s868 + $0x18] sm:%s858] %v875
                %s877 = sadd.s32 1, %s866
                %p878 = scmp.ge.s32.totalorder %s877, %s859
                %s879 = scalar_select %p878, 0, %s877
                %s880 = smul.u32 %s879, 32
                %s881 = smul.u32 %s879, 32
                %s882 = scalar_lea.vmem %s713, %s880 [#allocation3]
                %s883 = scalar_lea.vmem %s849, %s881
              $region121: #{tpu_custom_call.1} parent=115 // loop_footer
                %s863 = sadd.s32 %s861, 1
              $region122: #{tpu_custom_call.1} parent=115 // loop_footer_branch
                %860 = sbr.rel target = $region118
              $region123: #{tpu_custom_call.1} parent=115 // loop_exit
                _
              %s884 = sshrl.u32 %s845, 2
              %s885 = sand.u32 %s845, 3
              %s886 = smul.u32 %s884, 4
              %s887 = smul.u32 8, %s886
              %s888 = scalar_lea.vmem %s713, %s887 [#allocation3]
              %s889 = smul.u32 8, %s886
              %s890 = scalar_lea.vmem %s849, %s889
              // While loop
              $region124: #{tpu_custom_call.1} parent=115 // loop_pre_header
                _
              $region125: #{tpu_custom_call.1} parent=115 // loop_header
                %s892 = sphi 0, %s894
                %p893 = scmp.ge.s32.totalorder %s892, %s885
                %s897 = sphi 0, %s904
                %s898 = sphi %s888, %s907
                %s899 = sphi %s890, %s908
              $region126: #{tpu_custom_call.1} parent=115 // loop_header_branch
                %896 = sbr.rel (%p893) target = $region130
              $region127: #{tpu_custom_call.1} parent=115 // loop_body
                %v900 = vld [vmem:[%s898] sm:%s858]
                %901 = vst [vmem:[%s899] sm:%s858] %v900
                %s902 = sadd.s32 1, %s897
                %p903 = scmp.ge.s32.totalorder %s902, %s885
                %s904 = scalar_select %p903, 0, %s902
                %s905 = smul.u32 %s904, 8
                %s906 = smul.u32 %s904, 8
                %s907 = scalar_lea.vmem %s888, %s905 [#allocation3]
                %s908 = scalar_lea.vmem %s890, %s906
              $region128: #{tpu_custom_call.1} parent=115 // loop_footer
                %s894 = sadd.s32 %s892, 1
              $region129: #{tpu_custom_call.1} parent=115 // loop_footer_branch
                %891 = sbr.rel target = $region125
              $region130: #{tpu_custom_call.1} parent=115 // loop_exit
                _
            $region116: #{tpu_custom_call.1} parent=107 // pred_fallthru
              _
          $region108: #{tpu_custom_call.1} parent=103 // pred_fallthru
            _
          %963 = vnop
        $region104: #{tpu_custom_call.1} parent=47 // pred_fallthru
          _
      $region48: #{tpu_custom_call.1} parent=5 // pred_fallthru
        _
      %p964 = scmp.le.s32.totalorder 2, %s15
      // Predicated region
      $region153: #{tpu_custom_call.1} parent=5 // pred_check
        %p965 = pneg %p964
      $region154: #{tpu_custom_call.1} parent=5 // pred_check_branch
        %967 = sbr.rel (%p965) target = $region156
      $region155: #{tpu_custom_call.1} parent=5 // pred_region
        %s968 = ssub.s32 %s15, 2
        // Predicated region
        $region157: #{tpu_custom_call.1} parent=155 // pred_check
          %p969 = pneg %p196
        $region158: #{tpu_custom_call.1} parent=155 // pred_check_branch
          %971 = sbr.rel (%p969) target = $region160
        $region159: #{tpu_custom_call.1} parent=155 // pred_region
          %s972 = sand.u32 %s181, 1
          %s973 = sand.u32 %s181, 1
          %s974 = smul.addr %s973, 32
          %s975 = scalar_lea.vmem [#allocation2], %s974
        $region160: #{tpu_custom_call.1} parent=155 // pred_fallthru
          _
        // Predicated region
        $region161: #{tpu_custom_call.1} parent=155 // pred_check
          %p976 = pneg %p222
        $region162: #{tpu_custom_call.1} parent=155 // pred_check_branch
          %978 = sbr.rel (%p976) target = $region164
        $region163: #{tpu_custom_call.1} parent=155 // pred_region
          %s979 = sand.u32 %s207, 1
          %s980 = sand.u32 %s207, 1
          %s981 = smul.addr %s980, 32
          %s982 = scalar_lea.vmem [#allocation3], %s981
        $region164: #{tpu_custom_call.1} parent=155 // pred_fallthru
          _
      $region156: #{tpu_custom_call.1} parent=5 // pred_fallthru
        _
    $region6: #{tpu_custom_call.1} parent=1 // loop_footer
      %s19 = sadd.s32 1, %s15
    $region7: #{tpu_custom_call.1} parent=1 // loop_footer_branch
      %14 = sbr.rel target = $region3
    $region8: #{tpu_custom_call.1} parent=1 // loop_exit
      _

</llo_original>
